<compile_context>
chip_gen: v5e
topology: v5e:2x2
jax: 0.10.0
libtpu: 0.0.40
codegen_flags: <defaults>
</compile_context>

<pallas_src>
import functools

import jax
import jax.numpy as jnp
from jax.experimental import pallas as pl
from jax.experimental.pallas import tpu as pltpu


def _critic_kernel(x_ref, w1_ref, b1_ref, w2_ref, b2_ref, w3_ref, b3_ref, o_ref):
    # fc1: bf16 MXU matmul, f32 accumulate; bias + ReLU in f32 on the VPU.
    x_bf16 = x_ref[...].astype(jnp.bfloat16)
    h1 = jnp.dot(x_bf16, w1_ref[...], preferred_element_type=jnp.float32)
    h1 = jnp.maximum(h1 + b1_ref[...], 0.0)

    # fc2: bf16 MXU matmul, f32 accumulate; bias + ReLU in f32.
    h2 = jnp.dot(h1.astype(jnp.bfloat16), w2_ref[...],
                 preferred_element_type=jnp.float32)
    h2 = jnp.maximum(h2 + b2_ref[...], 0.0)

    # fc3 (output_dim == 1): VPU multiply + lane reduction instead of a
    # [tile_b, 256] x [256, 1] MXU matmul; w3 is stored lane-dense as (1, 256).
    v = jnp.sum(h2 * w3_ref[...], axis=-1, keepdims=True) + b3_ref[...]
    # Cheap XLU transpose of the (tile_b, 1) column to a lane-dense (1, tile_b)
    # row so the output block stores are unmasked and not 128-lane padded.
    o_ref[...] = jnp.transpose(v).astype(o_ref.dtype)


def _round_up(n, m):
    return ((n + m - 1) // m) * m


def _ceil_div(a, b):
    return -(-a // b)


def _plan_tiling(batch, input_dim, hidden_dim, tile_b):
    """Pick (tile, num_tiles, vmem_limit_bytes) from a per-row VMEM budget."""
    # Per-TensorCore VMEM capacity; conservative fallback (v7x-sized) if the
    # query is unavailable in this jax version.
    try:
        vmem_cap = int(pltpu.get_tpu_info().vmem_capacity_bytes)
    except Exception:  # pragma: no cover - defensive fallback
        vmem_cap = 64 << 20

    # Raise the scoped limit above the default, leaving physical headroom:
    #   128 MiB chips (v5e/v6e) -> 96 MiB, 64 MiB chips (v7x) -> 48 MiB.
    vmem_limit = int(min((3 * vmem_cap) // 4, 96 << 20))

    if tile_b is None:
        # Per-row activation footprint (bytes):
        #   x block (lane-padded to 128, double buffered) + bf16 x copy
        #   + f32 h1 + bf16 h1 + f32 h2
        #   + (tile_b, 1) fc3 column (lane padded) + lane-dense out row (x2).
        per_row = (
            2 * 4 * _round_up(input_dim, 128)
            + 2 * input_dim
            + (4 + 2) * hidden_dim
            + 4 * hidden_dim
            + 4 * 128
            + 2 * 4
        )
        budget = vmem_limit // 2  # 50% headroom for compiler scratch / spills
        cap_hi = 8192 if vmem_cap >= (100 << 20) else 4096
        cap = (budget // per_row) // 128 * 128
        cap = max(1024, min(cap_hi, cap))
    else:
        cap = max(8, int(tile_b))

    if batch <= cap:
        num_tiles = 1
        tile = _round_up(batch, 8)
    else:
        # Size the tile so the last tile is nearly full (minimal pad waste);
        # multiple of 128 keeps the lane-dense (1, tile) out block legal.
        num_tiles = _ceil_div(batch, cap)
        tile = _round_up(_ceil_div(batch, num_tiles), 128)
    return tile, num_tiles, vmem_limit


@functools.partial(jax.jit, static_argnames=("tile_b",))
def critic_forward(x, params, *, tile_b=None):
    """x: [B, input_dim] float32. params: dict with w1,b1,w2,b2,w3,b3.

    w1: [in, hid], w2: [hid, hid] (PyTorch W.T), w3: [1, hid] (pre-transposed),
    b1/b2: [1, hid], b3: [1, 1]. Returns [B, 1] float32.
    """
    w1, b1 = params["w1"], params["b1"]
    w2, b2 = params["w2"], params["b2"]
    w3, b3 = params["w3"], params["b3"]

    B, input_dim = x.shape
    hidden_dim = w1.shape[1]
    out_dim = b3.shape[1]  # == 1

    tile, num_tiles, vmem_limit = _plan_tiling(B, input_dim, hidden_dim, tile_b)
    b_pad = num_tiles * tile
    if b_pad != B:
        x = jnp.pad(x, ((0, b_pad - B), (0, 0)))

    # bf16 weights for the MXU (halves weight DMA); accumulation stays f32.
    w1_bf = w1.astype(jnp.bfloat16)
    w2_bf = w2.astype(jnp.bfloat16)

    grid = (num_tiles,)

    flops = 2 * b_pad * (input_dim * hidden_dim + hidden_dim * hidden_dim + hidden_dim)
    bytes_accessed = (
        b_pad * input_dim * 4              # x in
        + b_pad * 4                        # value out
        + w1_bf.size * 2 + w2_bf.size * 2  # bf16 weights (read once per core)
        + (b1.size + b2.size + w3.size + b3.size) * 4
    )

    out = pl.pallas_call(
        _critic_kernel,
        out_shape=jax.ShapeDtypeStruct((1, b_pad), jnp.float32),
        grid=grid,
        in_specs=[
            pl.BlockSpec((tile, input_dim), lambda i: (i, 0)),        # x tile
            pl.BlockSpec((input_dim, hidden_dim), lambda i: (0, 0)),  # w1 (resident)
            pl.BlockSpec((1, hidden_dim), lambda i: (0, 0)),          # b1
            pl.BlockSpec((hidden_dim, hidden_dim), lambda i: (0, 0)), # w2 (resident)
            pl.BlockSpec((1, hidden_dim), lambda i: (0, 0)),          # b2
            pl.BlockSpec((1, hidden_dim), lambda i: (0, 0)),          # w3 row
            pl.BlockSpec((1, out_dim), lambda i: (0, 0)),             # b3
        ],
        # Lane-dense output row: (1, tile) blocks of a (1, b_pad) array.
        out_specs=pl.BlockSpec((1, tile), lambda i: (0, i)),
        compiler_params=pltpu.CompilerParams(
            dimension_semantics=("parallel",),
            vmem_limit_bytes=vmem_limit,
        ),
        cost_estimate=pl.CostEstimate(
            flops=flops, transcendentals=0, bytes_accessed=bytes_accessed
        ),
    )(x, w1_bf, b1, w2_bf, b2, w3, b3)

    # (1, b_pad) -> (b_pad, 1) is a free row-major reshape; slice off padding.
    return out.reshape(b_pad, out_dim)[:B]


def init_critic_params(key, input_dim, output_dim, hidden_dim=256):
    assert output_dim == 1
    k1, k2, k3, k4, k5, k6 = jax.random.split(key, 6)

    def lin(kw, kb, fan_in, fan_out):
        # PyTorch nn.Linear default init: U(-1/sqrt(fan_in), 1/sqrt(fan_in))
        bound = 1.0 / jnp.sqrt(jnp.float32(fan_in))
        w = jax.random.uniform(kw, (fan_in, fan_out), jnp.float32, -bound, bound)
        b = jax.random.uniform(kb, (1, fan_out), jnp.float32, -bound, bound)
        return w, b

    w1, b1 = lin(k1, k2, input_dim, hidden_dim)
    w2, b2 = lin(k3, k4, hidden_dim, hidden_dim)
    w3_col, b3 = lin(k5, k6, hidden_dim, output_dim)
    # Store w3 pre-transposed as a lane-dense (1, hidden_dim) row — the layout
    # the VPU-reduce fc3 consumes; avoids a (256, 1) lane-padded buffer.
    w3 = w3_col.T  # (1, hidden_dim)
    return {"w1": w1, "b1": b1, "w2": w2, "b2": b2, "w3": w3, "b3": b3}


def _reference(x, p):
    h1 = jnp.maximum(x @ p["w1"] + p["b1"], 0.0)
    h2 = jnp.maximum(h1 @ p["w2"] + p["b2"], 0.0)
    return h2 @ p["w3"].T + p["b3"]


if __name__ == "__main__":
    key = jax.random.PRNGKey(0)
    k_x, k_p, k_x2 = jax.random.split(key, 3)

    batch, input_dim, hidden_dim, output_dim = 8, 32, 256, 1
    params = init_critic_params(k_p, input_dim, output_dim, hidden_dim)

    # Small single-tile case (matches the module's expected small shapes).
    x = jax.random.normal(k_x, (batch, input_dim), jnp.float32)
    value = jax.block_until_ready(critic_forward(x, params))
    ref = _reference(x, params)
    assert value.shape == (batch, output_dim)
    # bf16 MXU inputs (f32 accumulation) => loosened tolerance for a value head.
    assert jnp.allclose(value, ref, atol=5e-2, rtol=5e-2), (
        jnp.max(jnp.abs(value - ref))
    )

    # Multi-tile case: exercises the batch grid, minimal padding, and the
    # lane-dense (1, tile) output path with more than one grid step.
    batch2 = 300
    x2 = jax.random.normal(k_x2, (batch2, input_dim), jnp.float32)
    value2 = jax.block_until_ready(critic_forward(x2, params, tile_b=128))
    ref2 = _reference(x2, params)
    assert value2.shape == (batch2, output_dim)
    assert jnp.allclose(value2, ref2, atol=5e-2, rtol=5e-2), (
        jnp.max(jnp.abs(value2 - ref2))
    )

    print("KERNEL_OK")
</pallas_src>

<mosaic_0001>
module attributes {stable_mosaic.version = 11 : i64} {
  func.func @_critic_kernel(%arg0: i32, %arg1: memref<8x32xf32, #tpu.memory_space<vmem>>, %arg2: memref<32x256xbf16, #tpu.memory_space<vmem>>, %arg3: memref<1x256xf32, #tpu.memory_space<vmem>>, %arg4: memref<256x256xbf16, #tpu.memory_space<vmem>>, %arg5: memref<1x256xf32, #tpu.memory_space<vmem>>, %arg6: memref<1x256xf32, #tpu.memory_space<vmem>>, %arg7: memref<1x1xf32, #tpu.memory_space<vmem>>, %arg8: memref<1x8xf32, #tpu.memory_space<vmem>>) attributes {dimension_semantics = [#tpu.dimension_semantics<parallel>], iteration_bounds = array<i64: 1>, scalar_prefetch = 0 : i64, scratch_operands = 0 : i64, tpu.core_type = #tpu.core_type<tc>, window_params = [{transform_indices = @transform_0, window_bounds = array<i64: 8, 32>}, {pipeline_mode = #tpu.pipeline_mode<synchronous>, transform_indices = @transform_1, window_bounds = array<i64: 32, 256>}, {pipeline_mode = #tpu.pipeline_mode<synchronous>, transform_indices = @transform_2, window_bounds = array<i64: 1, 256>}, {pipeline_mode = #tpu.pipeline_mode<synchronous>, transform_indices = @transform_3, window_bounds = array<i64: 256, 256>}, {pipeline_mode = #tpu.pipeline_mode<synchronous>, transform_indices = @transform_4, window_bounds = array<i64: 1, 256>}, {pipeline_mode = #tpu.pipeline_mode<synchronous>, transform_indices = @transform_5, window_bounds = array<i64: 1, 256>}, {pipeline_mode = #tpu.pipeline_mode<synchronous>, transform_indices = @transform_6, window_bounds = array<i64: 1, 1>}, {transform_indices = @transform_7, window_bounds = array<i64: 1, 8>}]} {
    %c0 = arith.constant 0 : index
    %c0_0 = arith.constant 0 : index
    %0 = vector.load %arg1[%c0, %c0_0] : memref<8x32xf32, #tpu.memory_space<vmem>>, vector<8x32xf32>
    %1 = arith.truncf %0 : vector<8x32xf32> to vector<8x32xbf16>
    %c0_1 = arith.constant 0 : index
    %c0_2 = arith.constant 0 : index
    %2 = vector.load %arg2[%c0_1, %c0_2] : memref<32x256xbf16, #tpu.memory_space<vmem>>, vector<32x256xbf16>
    %cst = arith.constant dense<0.000000e+00> : vector<8x256xf32>
    %3 = tpu.matmul %1, %2, %cst {dimension_numbers = #tpu.dot_dimension_numbers<[1], [0], [0], [1], [0, 0, 1, 1], [], []>} : vector<8x32xbf16>, vector<32x256xbf16>, vector<8x256xf32> -> vector<8x256xf32>
    %c0_3 = arith.constant 0 : index
    %c0_4 = arith.constant 0 : index
    %4 = vector.load %arg3[%c0_3, %c0_4] : memref<1x256xf32, #tpu.memory_space<vmem>>, vector<1x256xf32>
    %5 = vector.broadcast %4 : vector<1x256xf32> to vector<8x256xf32>
    %6 = arith.addf %3, %5 : vector<8x256xf32>
    %cst_5 = arith.constant 0.000000e+00 : f32
    %7 = vector.broadcast %cst_5 : f32 to vector<8x256xf32>
    %8 = arith.maximumf %6, %7 : vector<8x256xf32>
    %9 = arith.truncf %8 : vector<8x256xf32> to vector<8x256xbf16>
    %c0_6 = arith.constant 0 : index
    %c0_7 = arith.constant 0 : index
    %10 = vector.load %arg4[%c0_6, %c0_7] : memref<256x256xbf16, #tpu.memory_space<vmem>>, vector<256x256xbf16>
    %cst_8 = arith.constant dense<0.000000e+00> : vector<8x256xf32>
    %11 = tpu.matmul %9, %10, %cst_8 {dimension_numbers = #tpu.dot_dimension_numbers<[1], [0], [0], [1], [0, 0, 1, 1], [], []>} : vector<8x256xbf16>, vector<256x256xbf16>, vector<8x256xf32> -> vector<8x256xf32>
    %c0_9 = arith.constant 0 : index
    %c0_10 = arith.constant 0 : index
    %12 = vector.load %arg5[%c0_9, %c0_10] : memref<1x256xf32, #tpu.memory_space<vmem>>, vector<1x256xf32>
    %13 = vector.broadcast %12 : vector<1x256xf32> to vector<8x256xf32>
    %14 = arith.addf %11, %13 : vector<8x256xf32>
    %cst_11 = arith.constant 0.000000e+00 : f32
    %15 = vector.broadcast %cst_11 : f32 to vector<8x256xf32>
    %16 = arith.maximumf %14, %15 : vector<8x256xf32>
    %c0_12 = arith.constant 0 : index
    %c0_13 = arith.constant 0 : index
    %17 = vector.load %arg6[%c0_12, %c0_13] : memref<1x256xf32, #tpu.memory_space<vmem>>, vector<1x256xf32>
    %18 = vector.broadcast %17 : vector<1x256xf32> to vector<8x256xf32>
    %19 = arith.mulf %16, %18 : vector<8x256xf32>
    %cst_14 = arith.constant dense<0.000000e+00> : vector<8xf32>
    %20 = vector.multi_reduction <add>, %19, %cst_14 [1] : vector<8x256xf32> to vector<8xf32>
    %21 = vector.shape_cast %20 : vector<8xf32> to vector<8x1xf32>
    %c0_15 = arith.constant 0 : index
    %c0_16 = arith.constant 0 : index
    %22 = vector.load %arg7[%c0_15, %c0_16] : memref<1x1xf32, #tpu.memory_space<vmem>>, vector<1x1xf32>
    %23 = vector.broadcast %22 : vector<1x1xf32> to vector<8x1xf32>
    %24 = arith.addf %21, %23 : vector<8x1xf32>
    %25 = tpu.transpose %24, [1, 0] : vector<8x1xf32> -> vector<1x8xf32>
    %c0_17 = arith.constant 0 : index
    %c0_18 = arith.constant 0 : index
    %26 = vector.load %arg8[%c0_17, %c0_18] : memref<1x8xf32, #tpu.memory_space<vmem>>, vector<1x8xf32>
    tpu.vector_store %arg8[%c0_17, %c0_18], %25 {strides = array<i32>} : memref<1x8xf32, #tpu.memory_space<vmem>>, vector<1x8xf32>,
    return
  }
  func.func @transform_0(%arg0: i32) -> (i32, i32) {
    %c0_i32 = arith.constant 0 : i32
    %c0_i32_0 = arith.constant 0 : i32
    return %arg0, %c0_i32 : i32, i32
  }
  func.func @transform_1(%arg0: i32) -> (i32, i32) {
    %c0_i32 = arith.constant 0 : i32
    %c0_i32_0 = arith.constant 0 : i32
    %c0_i32_1 = arith.constant 0 : i32
    return %c0_i32, %c0_i32_0 : i32, i32
  }
  func.func @transform_2(%arg0: i32) -> (i32, i32) {
    %c0_i32 = arith.constant 0 : i32
    %c0_i32_0 = arith.constant 0 : i32
    %c0_i32_1 = arith.constant 0 : i32
    return %c0_i32, %c0_i32_0 : i32, i32
  }
  func.func @transform_3(%arg0: i32) -> (i32, i32) {
    %c0_i32 = arith.constant 0 : i32
    %c0_i32_0 = arith.constant 0 : i32
    %c0_i32_1 = arith.constant 0 : i32
    return %c0_i32, %c0_i32_0 : i32, i32
  }
  func.func @transform_4(%arg0: i32) -> (i32, i32) {
    %c0_i32 = arith.constant 0 : i32
    %c0_i32_0 = arith.constant 0 : i32
    %c0_i32_1 = arith.constant 0 : i32
    return %c0_i32, %c0_i32_0 : i32, i32
  }
  func.func @transform_5(%arg0: i32) -> (i32, i32) {
    %c0_i32 = arith.constant 0 : i32
    %c0_i32_0 = arith.constant 0 : i32
    %c0_i32_1 = arith.constant 0 : i32
    return %c0_i32, %c0_i32_0 : i32, i32
  }
  func.func @transform_6(%arg0: i32) -> (i32, i32) {
    %c0_i32 = arith.constant 0 : i32
    %c0_i32_0 = arith.constant 0 : i32
    %c0_i32_1 = arith.constant 0 : i32
    return %c0_i32, %c0_i32_0 : i32, i32
  }
  func.func @transform_7(%arg0: i32) -> (i32, i32) {
    %c0_i32 = arith.constant 0 : i32
    %c0_i32_0 = arith.constant 0 : i32
    return %c0_i32, %arg0 : i32, i32
  }
}

</mosaic_0001>

<llo_original>
// kernel: critic_forward.1
$region0: #{critic_forward.1}
  #allocation0 [shape = 'u32[]', space=smem, size = 0x4, offset = 0x4, fixed_abs, tag = 'smem constant byte address 0x4 - core index']
  #allocation1 [shape = 'u32[72,128]{1,0:T(1,128)}', space=vmem, size = 0x9000, scoped, tag = 'internal scratch']
  #allocation2 [shape = 'f32[1,1]{1,0:T(1,128)S(1)}', space=vmem, size = 0x200, scoped, tag = 'scoped memory for critic_forward.1']
  %s0 = inlined_call_operand.vmem [shape: f32[8,32], index: 0, kind: input, shape index: {}]
  %s1 = inlined_call_operand.vmem [shape: bf16[32,256], index: 1, kind: input, shape index: {}]
  %s2 = inlined_call_operand.vmem [shape: f32[1,256], index: 2, kind: input, shape index: {}]
  %s3 = inlined_call_operand.vmem [shape: bf16[256,256], index: 3, kind: input, shape index: {}]
  %s4 = inlined_call_operand.vmem [shape: f32[1,256], index: 4, kind: input, shape index: {}]
  %s5 = inlined_call_operand.vmem [shape: f32[1,256], index: 5, kind: input, shape index: {}]
  %s6 = inlined_call_operand.<no memory space> [shape: f32[1,1], index: 6, kind: input, shape index: {}]
  %s7 = inlined_call_operand.hbm [shape: f32[1,8], index: 7, kind: output, shape index: {}]
  %s8 = sld [smem:[#allocation0]]
  $region38: #{critic_forward.1} parent=0
    _
  %s10 = ssub.s32 1, %s8
  %s11 = scalar_select 0, %s10, %s8
  %v12 = vstv %s6
  %13 = vst [vmem:[#allocation2] sm:$0x1] %v12
  $region1: #{critic_forward.1} parent=0
    #allocation3 [shape = 'u8[512]{0}', space=vmem, size = 0x400, scoped, tag = 'output window, operand 0, single buffered']
    #allocation4 [shape = 's32[1]{0}', space=sflag, size = 0x4, scoped, tag = 'scoped memory for critic_forward.1']
    %14 = vsyncpa [#allocation4], 0
    // Predicated region
    $region2: #{critic_forward.1} parent=1 // pred_check
      _
    $region3: #{critic_forward.1} parent=1 // pred_check_branch
      %16 = sbr.rel (0) target = $region5
    $region4: #{critic_forward.1} parent=1 // pred_region
      _
    $region5: #{critic_forward.1} parent=1 // pred_fallthru
      _
    // Predicated region
    $region6: #{critic_forward.1} parent=1 // pred_check
      _
    $region7: #{critic_forward.1} parent=1 // pred_check_branch
      %18 = sbr.rel (0) target = $region9
    $region8: #{critic_forward.1} parent=1 // pred_region
      _
    $region9: #{critic_forward.1} parent=1 // pred_fallthru
      _
    // Predicated region
    $region10: #{critic_forward.1} parent=1 // pred_check
      _
    $region11: #{critic_forward.1} parent=1 // pred_check_branch
      %20 = sbr.rel (0) target = $region13
    $region12: #{critic_forward.1} parent=1 // pred_region
      _
    $region13: #{critic_forward.1} parent=1 // pred_fallthru
      _
    // Predicated region
    $region14: #{critic_forward.1} parent=1 // pred_check
      _
    $region15: #{critic_forward.1} parent=1 // pred_check_branch
      %22 = sbr.rel (0) target = $region17
    $region16: #{critic_forward.1} parent=1 // pred_region
      _
    $region17: #{critic_forward.1} parent=1 // pred_fallthru
      _
    // Predicated region
    $region18: #{critic_forward.1} parent=1 // pred_check
      _
    $region19: #{critic_forward.1} parent=1 // pred_check_branch
      %24 = sbr.rel (0) target = $region21
    $region20: #{critic_forward.1} parent=1 // pred_region
      _
    $region21: #{critic_forward.1} parent=1 // pred_fallthru
      _
    // Predicated region
    $region22: #{critic_forward.1} parent=1 // pred_check
      _
    $region23: #{critic_forward.1} parent=1 // pred_check_branch
      %26 = sbr.rel (0) target = $region25
    $region24: #{critic_forward.1} parent=1 // pred_region
      _
    $region25: #{critic_forward.1} parent=1 // pred_fallthru
      _
    // Predicated region
    $region26: #{critic_forward.1} parent=1 // pred_check
      _
    $region27: #{critic_forward.1} parent=1 // pred_check_branch
      %28 = sbr.rel (0) target = $region29
    $region28: #{critic_forward.1} parent=1 // pred_region
      _
    $region29: #{critic_forward.1} parent=1 // pred_fallthru
      _
    %v30 = vld [vmem:[%s0] sm:$0xff]
    %v31 = vpack.c.bf16 %v30, %v30
    %v32 = vld [vmem:[%s1] sm:$0xff]
    %v33 = vld [vmem:[%s1 + $0x8] sm:$0xff]
    %v34 = vld [vmem:[%s1 + $0x10] sm:$0xff]
    %v35 = vld [vmem:[%s1 + $0x18] sm:$0xff]
    %v36 = vld [vmem:[%s2] sm:$0x3]
    %v38 = vperm.slane %v36, 0
    %v39 = vperm.slane %v36, 1
    %v46 = vunpack.c.l.b16 %v32
    %v47 = vunpack.c.h.b16 %v32
    %v48 = vunpack.c.l.b16 %v33
    %v49 = vunpack.c.h.b16 %v33
    %v50 = vunpack.c.l.b16 %v34
    %v51 = vunpack.c.h.b16 %v34
    %v52 = vunpack.c.l.b16 %v35
    %v53 = vunpack.c.h.b16 %v35
    %v54 = vpack.c.b16 %v48, %v46
    %v55 = vpack.c.b16 %v49, %v47
    %v56 = vpack.c.b16 %v52, %v50
    %v57 = vpack.c.b16 %v53, %v51
    %vm62 = vcmask 261120
    %v64 = vsel %vm62, %v31, 0
    %66 = vmatpush.bf16.msra.mxu0 0
    %67 = vmatpush.bf16.msra.mxu0 0
    %68 = vmatpush.bf16.msra.mxu0 0
    %69 = vmatpush.bf16.msra.mxu0 0
    %70 = vmatpush.bf16.msra.mxu0 0
    %71 = vmatpush.bf16.msra.mxu0 0
    %72 = vmatpush.bf16.msra.mxu0 %v56
    %73 = vmatpush.bf16.msra.mxu0 %v54
    %74 = vmatmul.bf16.gmra.mxu0 %v64
    %v75 = vpop.f32.mrf.mxu0
    %v76 = vadd.f32 %v38, %v75
    %v77 = vpop.f32.mrf.mxu0
    %78 = vdwg.mxu0
    %79 = vmatpush.bf16.msra.mxu0 0
    %80 = vmatpush.bf16.msra.mxu0 0
    %81 = vmatpush.bf16.msra.mxu0 0
    %82 = vmatpush.bf16.msra.mxu0 0
    %83 = vmatpush.bf16.msra.mxu0 0
    %84 = vmatpush.bf16.msra.mxu0 0
    %85 = vmatpush.bf16.msra.mxu0 %v57
    %86 = vmatpush.bf16.msra.mxu0 %v55
    %87 = vmatmul.bf16.gmra.mxu0 %v64
    %v88 = vpop.f32.mrf.mxu0
    %v89 = vadd.f32 %v39, %v88
    %v90 = vpop.f32.mrf.mxu0
    %91 = vdwg.mxu0
    %v92 = vmax.f32 %v76, 0.0
    %v93 = vmax.f32 %v89, 0.0
    %v94 = vpack.c.bf16 %v92, %v92
    %v95 = vpack.c.bf16 %v93, %v93
    %v96 = vld [vmem:[%s3] sm:$0xff]
    %v97 = vld [vmem:[%s3 + $0x8] sm:$0xff]
    %v98 = vld [vmem:[%s3 + $0x10] sm:$0xff]
    %v99 = vld [vmem:[%s3 + $0x18] sm:$0xff]
    %v100 = vld [vmem:[%s3 + $0x20] sm:$0xff]
    %v101 = vld [vmem:[%s3 + $0x28] sm:$0xff]
    %v102 = vld [vmem:[%s3 + $0x30] sm:$0xff]
    %v103 = vld [vmem:[%s3 + $0x38] sm:$0xff]
    %v104 = vld [vmem:[%s3 + $0x40] sm:$0xff]
    %v105 = vld [vmem:[%s3 + $0x48] sm:$0xff]
    %v106 = vld [vmem:[%s3 + $0x50] sm:$0xff]
    %v107 = vld [vmem:[%s3 + $0x58] sm:$0xff]
    %v108 = vld [vmem:[%s3 + $0x60] sm:$0xff]
    %v109 = vld [vmem:[%s3 + $0x68] sm:$0xff]
    %v110 = vld [vmem:[%s3 + $0x70] sm:$0xff]
    %v111 = vld [vmem:[%s3 + $0x78] sm:$0xff]
    %v112 = vld [vmem:[%s3 + $0x80] sm:$0xff]
    %v113 = vld [vmem:[%s3 + $0x88] sm:$0xff]
    %v114 = vld [vmem:[%s3 + $0x90] sm:$0xff]
    %v115 = vld [vmem:[%s3 + $0x98] sm:$0xff]
    %v116 = vld [vmem:[%s3 + $0xa0] sm:$0xff]
    %v117 = vld [vmem:[%s3 + $0xa8] sm:$0xff]
    %v118 = vld [vmem:[%s3 + $0xb0] sm:$0xff]
    %v119 = vld [vmem:[%s3 + $0xb8] sm:$0xff]
    %v120 = vld [vmem:[%s3 + $0xc0] sm:$0xff]
    %v121 = vld [vmem:[%s3 + $0xc8] sm:$0xff]
    %v122 = vld [vmem:[%s3 + $0xd0] sm:$0xff]
    %v123 = vld [vmem:[%s3 + $0xd8] sm:$0xff]
    %v124 = vld [vmem:[%s3 + $0xe0] sm:$0xff]
    %v125 = vld [vmem:[%s3 + $0xe8] sm:$0xff]
    %v126 = vld [vmem:[%s3 + $0xf0] sm:$0xff]
    %v127 = vld [vmem:[%s3 + $0xf8] sm:$0xff]
    %v128 = vld [vmem:[%s4] sm:$0x3]
    %v130 = vperm.slane %v128, 0
    %v131 = vperm.slane %v128, 1
    %v166 = vunpack.c.l.b16 %v96
    %v167 = vunpack.c.h.b16 %v96
    %v168 = vunpack.c.l.b16 %v97
    %v169 = vunpack.c.h.b16 %v97
    %v170 = vunpack.c.l.b16 %v98
    %v171 = vunpack.c.h.b16 %v98
    %v172 = vunpack.c.l.b16 %v99
    %v173 = vunpack.c.h.b16 %v99
    %v174 = vunpack.c.l.b16 %v100
    %v175 = vunpack.c.h.b16 %v100
    %v176 = vunpack.c.l.b16 %v101
    %v177 = vunpack.c.h.b16 %v101
    %v178 = vunpack.c.l.b16 %v102
    %v179 = vunpack.c.h.b16 %v102
    %v180 = vunpack.c.l.b16 %v103
    %v181 = vunpack.c.h.b16 %v103
    %v182 = vunpack.c.l.b16 %v104
    %v183 = vunpack.c.h.b16 %v104
    %v184 = vunpack.c.l.b16 %v105
    %v185 = vunpack.c.h.b16 %v105
    %v186 = vunpack.c.l.b16 %v106
    %v187 = vunpack.c.h.b16 %v106
    %v188 = vunpack.c.l.b16 %v107
    %v189 = vunpack.c.h.b16 %v107
    %v190 = vunpack.c.l.b16 %v108
    %v191 = vunpack.c.h.b16 %v108
    %v192 = vunpack.c.l.b16 %v109
    %v193 = vunpack.c.h.b16 %v109
    %v194 = vunpack.c.l.b16 %v110
    %v195 = vunpack.c.h.b16 %v110
    %v196 = vunpack.c.l.b16 %v111
    %v197 = vunpack.c.h.b16 %v111
    %v198 = vunpack.c.l.b16 %v112
    %v199 = vunpack.c.h.b16 %v112
    %v200 = vunpack.c.l.b16 %v113
    %v201 = vunpack.c.h.b16 %v113
    %v202 = vunpack.c.l.b16 %v114
    %v203 = vunpack.c.h.b16 %v114
    %v204 = vunpack.c.l.b16 %v115
    %v205 = vunpack.c.h.b16 %v115
    %v206 = vunpack.c.l.b16 %v116
    %v207 = vunpack.c.h.b16 %v116
    %v208 = vunpack.c.l.b16 %v117
    %v209 = vunpack.c.h.b16 %v117
    %v210 = vunpack.c.l.b16 %v118
    %v211 = vunpack.c.h.b16 %v118
    %v212 = vunpack.c.l.b16 %v119
    %v213 = vunpack.c.h.b16 %v119
    %v214 = vunpack.c.l.b16 %v120
    %v215 = vunpack.c.h.b16 %v120
    %v216 = vunpack.c.l.b16 %v121
    %v217 = vunpack.c.h.b16 %v121
    %v218 = vunpack.c.l.b16 %v122
    %v219 = vunpack.c.h.b16 %v122
    %v220 = vunpack.c.l.b16 %v123
    %v221 = vunpack.c.h.b16 %v123
    %v222 = vunpack.c.l.b16 %v124
    %v223 = vunpack.c.h.b16 %v124
    %v224 = vunpack.c.l.b16 %v125
    %v225 = vunpack.c.h.b16 %v125
    %v226 = vunpack.c.l.b16 %v126
    %v227 = vunpack.c.h.b16 %v126
    %v228 = vunpack.c.l.b16 %v127
    %v229 = vunpack.c.h.b16 %v127
    %v230 = vpack.c.b16 %v168, %v166
    %v231 = vpack.c.b16 %v169, %v167
    %v232 = vpack.c.b16 %v172, %v170
    %v233 = vpack.c.b16 %v173, %v171
    %v234 = vpack.c.b16 %v176, %v174
    %v235 = vpack.c.b16 %v177, %v175
    %v236 = vpack.c.b16 %v180, %v178
    %v237 = vpack.c.b16 %v181, %v179
    %v238 = vpack.c.b16 %v184, %v182
    %v239 = vpack.c.b16 %v185, %v183
    %v240 = vpack.c.b16 %v188, %v186
    %v241 = vpack.c.b16 %v189, %v187
    %v242 = vpack.c.b16 %v192, %v190
    %v243 = vpack.c.b16 %v193, %v191
    %v244 = vpack.c.b16 %v196, %v194
    %v245 = vpack.c.b16 %v197, %v195
    %v246 = vpack.c.b16 %v200, %v198
    %v247 = vpack.c.b16 %v201, %v199
    %v248 = vpack.c.b16 %v204, %v202
    %v249 = vpack.c.b16 %v205, %v203
    %v250 = vpack.c.b16 %v208, %v206
    %v251 = vpack.c.b16 %v209, %v207
    %v252 = vpack.c.b16 %v212, %v210
    %v253 = vpack.c.b16 %v213, %v211
    %v254 = vpack.c.b16 %v216, %v214
    %v255 = vpack.c.b16 %v217, %v215
    %v256 = vpack.c.b16 %v220, %v218
    %v257 = vpack.c.b16 %v221, %v219
    %v258 = vpack.c.b16 %v224, %v222
    %v259 = vpack.c.b16 %v225, %v223
    %v260 = vpack.c.b16 %v228, %v226
    %v261 = vpack.c.b16 %v229, %v227
    %294 = vmatpush.bf16.msra.mxu0 %v244
    %295 = vmatpush.bf16.msra.mxu0 %v242
    %296 = vmatpush.bf16.msra.mxu0 %v240
    %297 = vmatpush.bf16.msra.mxu0 %v238
    %298 = vmatpush.bf16.msra.mxu0 %v236
    %299 = vmatpush.bf16.msra.mxu0 %v234
    %300 = vmatpush.bf16.msra.mxu0 %v232
    %301 = vmatpush.bf16.msra.mxu0 %v230
    %302 = vmatmul.bf16.gmra.mxu0 %v94
    %v303 = vpop.f32.mrf.mxu0
    %v304 = vadd.f32 %v130, %v303
    %v305 = vpop.f32.mrf.mxu0
    %306 = vdwg.mxu0
    %307 = vmatpush.bf16.msra.mxu0 %v260
    %308 = vmatpush.bf16.msra.mxu0 %v258
    %309 = vmatpush.bf16.msra.mxu0 %v256
    %310 = vmatpush.bf16.msra.mxu0 %v254
    %311 = vmatpush.bf16.msra.mxu0 %v252
    %312 = vmatpush.bf16.msra.mxu0 %v250
    %313 = vmatpush.bf16.msra.mxu0 %v248
    %314 = vmatpush.bf16.msra.mxu0 %v246
    %315 = vmatmul.bf16.gmra.mxu0 %v95
    %v316 = vpop.f32.mrf.mxu0
    %v317 = vadd.f32 %v304, %v316
    %v318 = vpop.f32.mrf.mxu0
    %319 = vdwg.mxu0
    %320 = vmatpush.bf16.msra.mxu0 %v245
    %321 = vmatpush.bf16.msra.mxu0 %v243
    %322 = vmatpush.bf16.msra.mxu0 %v241
    %323 = vmatpush.bf16.msra.mxu0 %v239
    %324 = vmatpush.bf16.msra.mxu0 %v237
    %325 = vmatpush.bf16.msra.mxu0 %v235
    %326 = vmatpush.bf16.msra.mxu0 %v233
    %327 = vmatpush.bf16.msra.mxu0 %v231
    %328 = vmatmul.bf16.gmra.mxu0 %v94
    %v329 = vpop.f32.mrf.mxu0
    %v330 = vadd.f32 %v131, %v329
    %v331 = vpop.f32.mrf.mxu0
    %332 = vdwg.mxu0
    %333 = vmatpush.bf16.msra.mxu0 %v261
    %334 = vmatpush.bf16.msra.mxu0 %v259
    %335 = vmatpush.bf16.msra.mxu0 %v257
    %336 = vmatpush.bf16.msra.mxu0 %v255
    %337 = vmatpush.bf16.msra.mxu0 %v253
    %338 = vmatpush.bf16.msra.mxu0 %v251
    %339 = vmatpush.bf16.msra.mxu0 %v249
    %340 = vmatpush.bf16.msra.mxu0 %v247
    %341 = vmatmul.bf16.gmra.mxu0 %v95
    %v342 = vpop.f32.mrf.mxu0
    %v343 = vadd.f32 %v330, %v342
    %v344 = vpop.f32.mrf.mxu0
    %345 = vdwg.mxu0
    %v346 = vmax.f32 %v317, 0.0
    %v347 = vmax.f32 %v343, 0.0
    %v348 = vld [vmem:[%s5] sm:$0x3]
    %v350 = vperm.slane %v348, 0
    %v351 = vperm.slane %v348, 1
    %v354 = vmul.f32 %v346, %v350
    %v355 = vmul.f32 %v347, %v351
    %v356 = vadd.f32 %v354, %v355
    %357 = vadd.xlane.f32.xlu0 %v356
    %v358 = vpop.xlane.xlu0 %357
    %v359 = vld [vmem:[#allocation2] sm:$0x1]
    %v361 = vperm.slane %v359, 0
    %v363 = vadd.f32 %v358, %v361
    %364 = vxpose.xlu0.b32.start [1/16] %v363, 128
    %365 = vxpose.xlu0.b32.cont [2/16] 0.0, 128
    %366 = vxpose.xlu0.b32.cont [3/16] 0.0, 128
    %367 = vxpose.xlu0.b32.cont [4/16] 0.0, 128
    %368 = vxpose.xlu0.b32.cont [5/16] 0.0, 128
    %369 = vxpose.xlu0.b32.cont [6/16] 0.0, 128
    %370 = vxpose.xlu0.b32.cont [7/16] 0.0, 128
    %371 = vxpose.xlu0.b32.cont [8/16] 0.0, 128
    %372 = vxpose.xlu0.b32.cont [9/16] 0.0, 128
    %373 = vxpose.xlu0.b32.cont [10/16] 0.0, 128
    %374 = vxpose.xlu0.b32.cont [11/16] 0.0, 128
    %375 = vxpose.xlu0.b32.cont [12/16] 0.0, 128
    %376 = vxpose.xlu0.b32.cont [13/16] 0.0, 128
    %377 = vxpose.xlu0.b32.cont [14/16] 0.0, 128
    %378 = vxpose.xlu0.b32.cont [15/16] 0.0, 128
    %379 = vxpose.xlu0.b32.end [16/16] 0.0, 128
    %v380 = vpop.trf.xlu0
    %v381 = vpop.trf.xlu0
    %v382 = vpop.trf.xlu0
    %v383 = vpop.trf.xlu0
    %v384 = vpop.trf.xlu0
    %v385 = vpop.trf.xlu0
    %v386 = vpop.trf.xlu0
    %v387 = vpop.trf.xlu0
    %v388 = vpop.trf.xlu0
    %v389 = vpop.trf.xlu0
    %v390 = vpop.trf.xlu0
    %v391 = vpop.trf.xlu0
    %v392 = vpop.trf.xlu0
    %v393 = vpop.trf.xlu0
    %v394 = vpop.trf.xlu0
    %v395 = vpop.trf.xlu0
    %vm396 = vcmask 57344
    %397 = vst.msk [vmem:[#allocation3] sm:$0x1] %vm396, %v380
    // Predicated region
    $region30: #{critic_forward.1} parent=1 // pred_check
      _
    $region31: #{critic_forward.1} parent=1 // pred_check_branch
      %399 = sbr.rel (0) target = $region33
    $region32: #{critic_forward.1} parent=1 // pred_region
      %401 = vsyncadd [#allocation4], 0
      %s403 = sshll.u32 [#allocation3], 4
      %s404 = int_to_ptr.vmem [resolvable:$true] %s403
      %s405 = sshll.u32 %s7, 4
      %s406 = int_to_ptr.hbm [resolvable:$true] %s405
      %408 = dma.vmem_to_hbm [thread:$0]  %s404, 16, %s406, [#allocation4]
    $region33: #{critic_forward.1} parent=1 // pred_fallthru
      _
    // Predicated region
    $region34: #{critic_forward.1} parent=1 // pred_check
      _
    $region35: #{critic_forward.1} parent=1 // pred_check_branch
      %410 = sbr.rel (0) target = $region37
    $region36: #{critic_forward.1} parent=1 // pred_region
      %412 = dma.done [#allocation4], 16
    $region37: #{critic_forward.1} parent=1 // pred_fallthru
      _
    %413 = vsyncpa [#allocation4], 1

</llo_original>
